<compile_context>
chip_gen: v7x
topology: tpu7x:2x2x1
jax: 0.10.0
libtpu: 0.0.40
codegen_flags: <defaults>
</compile_context>

<pallas_src>
import functools

import jax
import jax.numpy as jnp
import numpy as np
from jax.experimental import pallas as pl
from jax.experimental.pallas import tpu as pltpu


def _round_up(v, m):
    return ((v + m - 1) // m) * m


def _sublane_packing(dtype):
    itemsize = jnp.dtype(dtype).itemsize
    return {4: 8, 2: 16, 1: 32}.get(itemsize, 8)


def _pick_hw_tiling(hw, per_lane_bytes, budget_bytes, n_batch):
    """Pad H*W to a lane multiple; pick the largest dividing tile under budget."""
    hw_pad = _round_up(hw, 128)
    n128 = hw_pad // 128
    max_blocks = max(1, budget_bytes // max(per_lane_bytes * 128, 1))
    best = 1
    for d in range(1, n128 + 1):
        if n128 % d == 0 and d <= max_blocks:
            best = d
    # Keep at least 2 grid steps (when possible) so both v7x TensorCores get work.
    if n_batch * (n128 // best) < 2:
        for d in range(best - 1, 0, -1):
            if n128 % d == 0:
                best = d
                break
    return hw_pad, 128 * best


def _noise_arrays(noise_seed, shape, add_coef, mult_coef, dtype):
    """Host-side (XLA) noise streams matching ShuffleMix._noise semantics."""
    key = jax.random.PRNGKey(int(noise_seed))
    k_mult, k_add = jax.random.split(key)
    mult = None
    add = None
    if mult_coef > 0.0:
        u = jax.random.uniform(k_mult, shape, dtype=jnp.float32)
        mult = (1.0 + mult_coef * (2.0 * u - 1.0)).astype(dtype)
    if add_coef > 0.0:
        g = jax.random.normal(k_add, shape, dtype=jnp.float32)
        add = (add_coef * g).astype(dtype)
    return mult, add


def _shufflemix_kernel(idx_ref, *refs, c_total, c_mix,
                       use_perm, use_mult, use_add):
    # idx_ref (scalar-prefetched permutation) is consumed by the index_maps only.
    del idx_ref
    it = iter(refs)
    x_ref = next(it)                       # (C, T) current batch element tile
    xp_ref = next(it) if use_perm else None  # (c_mix, T) gathered x[indices[i]]
    ws_ref = next(it)                      # (c_mix, 1) self weight
    wp_ref = next(it) if use_perm else None  # (c_mix, 1) permuted weight
    mult_ref = next(it) if use_mult else None  # (C, T) multiplicative noise
    add_ref = next(it) if use_add else None    # (C, T) additive noise
    o_ref = next(it)                       # (C, T) output tile

    # Mixed (low) channel block: x * w_self + x[indices] * w_perm, then noise.
    lo = x_ref[:c_mix, :] * ws_ref[...]
    if use_perm:
        lo = lo + xp_ref[...] * wp_ref[...]
    if use_mult:
        lo = lo * mult_ref[:c_mix, :]
    if use_add:
        lo = lo + add_ref[:c_mix, :]
    o_ref[:c_mix, :] = lo.astype(o_ref.dtype)

    # Unmixed (high) channels: w_self == 1, w_perm == 0 -> plain copy + noise.
    if c_mix < c_total:
        hi = x_ref[c_mix:, :]
        if use_mult:
            hi = hi * mult_ref[c_mix:, :]
        if use_add:
            hi = hi + add_ref[c_mix:, :]
        o_ref[c_mix:, :] = hi.astype(o_ref.dtype)


def shufflemix_mix_noise(x, indices, lam, channel_mask, add_coef, mult_coef,
                         noise_seed, ada_dropout=False,
                         vmem_budget_bytes=24 * 1024 * 1024):
    """ShuffleMix channel mixing + noise (the in-place update in forward/hook).

    x:            (N, C, H, W) float32/bfloat16 NCHW feature map.
    indices:      (N,) int batch permutation (torch.randperm equivalent).
    lam:          python float (Beta(alpha,alpha) for 'soft', 0 for 'hard').
    channel_mask: host (C,) 0/1 mask of mixed channels ('prefix' => first cx,
                  'random' => arbitrary subset).
    add_coef:     python float = add_noise_level * Beta(2, 5).
    mult_coef:    python float = mult_noise_level * Beta(2, 5).
    noise_seed:   python int seed for the wrapper-side noise draws.
    ada_dropout:  zero the selected channels instead of mixing (module then
                  reports lam = 1; that bookkeeping stays outside the kernel).
    """
    N, C, H, W = x.shape
    HW = H * W
    dtype = x.dtype
    itemsize = jnp.dtype(dtype).itemsize
    sub = _sublane_packing(dtype)

    mask = np.asarray(channel_mask, dtype=np.float32).reshape(C) > 0.0
    mask_f = mask.astype(np.float32)
    if ada_dropout:
        w_self_np = 1.0 - mask_f                      # output[:, sel] *= 0
        w_perm_np = np.zeros_like(mask_f)
    else:
        w_self_np = 1.0 - mask_f * (1.0 - float(lam))
        w_perm_np = mask_f * (1.0 - float(lam))

    # The gathered-batch stream only needs channels that can actually get mixed.
    span = int(np.max(np.nonzero(mask)[0])) + 1 if mask.any() else 1
    c_mix = min(_round_up(span, sub), C)

    use_perm = bool(np.any(w_perm_np[:c_mix] != 0.0))  # ada_dropout / lam==1 -> no gather
    use_mult = float(mult_coef) > 0.0
    use_add = float(add_coef) > 0.0

    # Per-lane VMEM footprint: double-buffered HBM streams + in-kernel temporaries.
    streams = 2 * C                                   # x in + out
    streams += c_mix if use_perm else 0
    streams += C if use_mult else 0
    streams += C if use_add else 0
    per_lane = 2 * streams * itemsize + 4 * C * 4
    hw_pad, t_hw = _pick_hw_tiling(HW, per_lane, vmem_budget_bytes, N)
    n_hw = hw_pad // t_hw

    x2 = x.reshape(N, C, HW)
    if hw_pad != HW:
        # Lane-dense stores: pad H*W up to a multiple of 128, slice back below.
        x2 = jnp.pad(x2, ((0, 0), (0, 0), (0, hw_pad - HW)))

    w_self = jnp.asarray(w_self_np[:c_mix], dtype=dtype).reshape(c_mix, 1)
    w_perm = jnp.asarray(w_perm_np[:c_mix], dtype=dtype).reshape(c_mix, 1)
    indices = jnp.asarray(indices, dtype=jnp.int32)

    mult_arr, add_arr = _noise_arrays(noise_seed, (N, C, hw_pad),
                                      float(add_coef), float(mult_coef), dtype)

    in_specs = [pl.BlockSpec((None, C, t_hw), lambda i, j, idx: (i, 0, j))]
    inputs = [x2]
    if use_perm:
        # Data-dependent gather of x[indices[i]], mixed channels only.
        in_specs.append(pl.BlockSpec((None, c_mix, t_hw),
                                     lambda i, j, idx: (idx[i], 0, j)))
        inputs.append(x2)
    in_specs.append(pl.BlockSpec((c_mix, 1), lambda i, j, idx: (0, 0)))
    inputs.append(w_self)
    if use_perm:
        in_specs.append(pl.BlockSpec((c_mix, 1), lambda i, j, idx: (0, 0)))
        inputs.append(w_perm)
    if use_mult:
        in_specs.append(pl.BlockSpec((None, C, t_hw), lambda i, j, idx: (i, 0, j)))
        inputs.append(mult_arr)
    if use_add:
        in_specs.append(pl.BlockSpec((None, C, t_hw), lambda i, j, idx: (i, 0, j)))
        inputs.append(add_arr)

    kernel = functools.partial(_shufflemix_kernel, c_total=C, c_mix=c_mix,
                               use_perm=use_perm, use_mult=use_mult,
                               use_add=use_add)

    vmem_limit = int(min(56 * 1024 * 1024,
                         max(32 * 1024 * 1024,
                             per_lane * t_hw + 8 * 1024 * 1024)))

    out = pl.pallas_call(
        kernel,
        out_shape=jax.ShapeDtypeStruct((N, C, hw_pad), dtype),
        grid_spec=pltpu.PrefetchScalarGridSpec(
            num_scalar_prefetch=1,                  # `indices` lands in SMEM
            grid=(N, n_hw),
            in_specs=in_specs,
            out_specs=pl.BlockSpec((None, C, t_hw), lambda i, j, idx: (i, 0, j)),
        ),
        compiler_params=pltpu.CompilerParams(
            dimension_semantics=("parallel", "parallel"),
            vmem_limit_bytes=vmem_limit,
        ),
    )(indices, *inputs)

    if hw_pad != HW:
        out = out[:, :, :HW]
    return out.reshape(N, C, H, W)


if __name__ == "__main__":
    key = jax.random.PRNGKey(0)
    kx, kperm, klam, kb1, kb2, kx2 = jax.random.split(key, 6)

    # Small NCHW feature map consistent with the module's conv-feature use.
    N, C, H, W = 4, 16, 16, 16
    alpha = 1.0              # conf.alpha (mix_type == 'soft')
    ratio = 0.25             # conf.ratio -> cx = 4
    add_noise_level = 0.1
    mult_noise_level = 0.1

    x = jax.random.normal(kx, (N, C, H, W), jnp.float32)
    target = jnp.arange(N, dtype=jnp.int32) % 10

    lam = float(jax.random.beta(klam, alpha, alpha))              # np.random.beta
    indices = jax.random.permutation(kperm, N).astype(jnp.int32)  # torch.randperm

    cx = max(int(C * ratio), 1)
    channel_mask = (np.arange(C) < cx).astype(np.float32)         # 'prefix' channels

    # noise coefficients: level * Beta(2, 5), drawn once per forward (as _noise does)
    add_coef = add_noise_level * float(jax.random.beta(kb1, 2.0, 5.0))
    mult_coef = mult_noise_level * float(jax.random.beta(kb2, 2.0, 5.0))

    # ---- pure-JAX reference for the deterministic mixing part ----
    mask4 = jnp.asarray(channel_mask).reshape(1, C, 1, 1)
    ref_mix = x * (1.0 - mask4 * (1.0 - lam)) + x[indices] * (mask4 * (1.0 - lam))

    # 1) noise disabled -> noise path elided at trace time; must match mixing ref.
    out_mix = shufflemix_mix_noise(x, indices, lam, channel_mask,
                                   add_coef=0.0, mult_coef=0.0, noise_seed=0)
    out_mix = jax.block_until_ready(out_mix)
    assert out_mix.shape == (N, C, H, W)
    assert jnp.allclose(out_mix, ref_mix, atol=1e-6, rtol=1e-6), "mix mismatch"

    # 2) full forward (mix + noise).  Noise arrays are reproducible from the seed,
    #    so the reference is exact (HW is already a lane multiple here).
    out = shufflemix_mix_noise(x, indices, lam, channel_mask,
                               add_coef=add_coef, mult_coef=mult_coef,
                               noise_seed=1234)
    out = jax.block_until_ready(out)
    mult_arr, add_arr = _noise_arrays(1234, (N, C, H * W), add_coef, mult_coef,
                                      jnp.float32)
    ref_noise = ref_mix
    if mult_arr is not None:
        ref_noise = ref_noise * mult_arr.reshape(N, C, H, W)
    if add_arr is not None:
        ref_noise = ref_noise + add_arr.reshape(N, C, H, W)
    assert jnp.allclose(out, ref_noise, atol=1e-5, rtol=1e-5), "noise mismatch"
    # deterministic for a fixed seed
    out_again = shufflemix_mix_noise(x, indices, lam, channel_mask,
                                     add_coef=add_coef, mult_coef=mult_coef,
                                     noise_seed=1234)
    assert bool(jnp.array_equal(out, jax.block_until_ready(out_again)))

    # 3) ada_dropout: selected channels zeroed, gather stream dropped at trace time.
    out_drop = shufflemix_mix_noise(x, indices, lam, channel_mask,
                                    add_coef=0.0, mult_coef=0.0, noise_seed=0,
                                    ada_dropout=True)
    ref_drop = x * (1.0 - mask4)
    assert jnp.allclose(jax.block_until_ready(out_drop), ref_drop,
                        atol=1e-6, rtol=1e-6), "ada_dropout mismatch"

    # 4) non-128-multiple spatial size (7x7) exercises the H*W lane padding path.
    H2 = W2 = 7
    xs = jax.random.normal(kx2, (N, C, H2, W2), jnp.float32)
    ref_s = xs * (1.0 - mask4 * (1.0 - lam)) + xs[indices] * (mask4 * (1.0 - lam))
    out_s = shufflemix_mix_noise(xs, indices, lam, channel_mask,
                                 add_coef=0.0, mult_coef=0.0, noise_seed=0)
    assert jnp.allclose(jax.block_until_ready(out_s), ref_s,
                        atol=1e-6, rtol=1e-6), "padded-HW mismatch"

    # 5) bf16 feature map: c_mix rounds to 16-sublane packing, math stays in bf16.
    xb = x.astype(jnp.bfloat16)
    out_b = shufflemix_mix_noise(xb, indices, lam, channel_mask,
                                 add_coef=0.0, mult_coef=0.0, noise_seed=0)
    out_b = jax.block_until_ready(out_b)
    assert out_b.dtype == jnp.bfloat16
    assert jnp.allclose(out_b.astype(jnp.float32), ref_mix,
                        atol=0.1, rtol=0.05), "bf16 mismatch"

    # values returned by ShuffleMix.forward (lam bookkeeping stays host-side)
    lam_new = 1.0 - cx / C * (1.0 - lam)
    result = (out, target, target[indices], lam_new)
    del result

    print("KERNEL_OK")
</pallas_src>

<mosaic_0001>
module attributes {stable_mosaic.version = 11 : i64} {
  func.func @_shufflemix_kernel(%arg0: i32, %arg1: i32, %arg2: memref<4xi32, #tpu.memory_space<smem>>, %arg3: memref<1x16x256xf32, #tpu.memory_space<vmem>>, %arg4: memref<1x8x256xf32, #tpu.memory_space<vmem>>, %arg5: memref<8x1xf32, #tpu.memory_space<vmem>>, %arg6: memref<8x1xf32, #tpu.memory_space<vmem>>, %arg7: memref<1x16x256xf32, #tpu.memory_space<vmem>>) attributes {dimension_semantics = [#tpu.dimension_semantics<parallel>, #tpu.dimension_semantics<parallel>], iteration_bounds = array<i64: 4, 1>, scalar_prefetch = 1 : i64, scratch_operands = 0 : i64, tpu.core_type = #tpu.core_type<tc>, window_params = [{transform_indices = @transform_0, window_bounds = array<i64: 1, 16, 256>}, {transform_indices = @transform_1, window_bounds = array<i64: 1, 8, 256>}, {pipeline_mode = #tpu.pipeline_mode<synchronous>, transform_indices = @transform_2, window_bounds = array<i64: 8, 1>}, {pipeline_mode = #tpu.pipeline_mode<synchronous>, transform_indices = @transform_3, window_bounds = array<i64: 8, 1>}, {transform_indices = @transform_4, window_bounds = array<i64: 1, 16, 256>}]} {
    %c0 = arith.constant 0 : index
    %c0_0 = arith.constant 0 : index
    %c0_1 = arith.constant 0 : index
    %0 = vector.load %arg3[%c0, %c0_0, %c0_1] : memref<1x16x256xf32, #tpu.memory_space<vmem>>, vector<1x8x256xf32>
    %1 = vector.shape_cast %0 : vector<1x8x256xf32> to vector<8x256xf32>
    %c0_2 = arith.constant 0 : index
    %c0_3 = arith.constant 0 : index
    %2 = vector.load %arg5[%c0_2, %c0_3] : memref<8x1xf32, #tpu.memory_space<vmem>>, vector<8x1xf32>
    %3 = vector.broadcast %2 : vector<8x1xf32> to vector<8x256xf32>
    %4 = arith.mulf %1, %3 : vector<8x256xf32>
    %c0_4 = arith.constant 0 : index
    %c0_5 = arith.constant 0 : index
    %c0_6 = arith.constant 0 : index
    %5 = vector.load %arg4[%c0_4, %c0_5, %c0_6] : memref<1x8x256xf32, #tpu.memory_space<vmem>>, vector<1x8x256xf32>
    %6 = vector.shape_cast %5 : vector<1x8x256xf32> to vector<8x256xf32>
    %c0_7 = arith.constant 0 : index
    %c0_8 = arith.constant 0 : index
    %7 = vector.load %arg6[%c0_7, %c0_8] : memref<8x1xf32, #tpu.memory_space<vmem>>, vector<8x1xf32>
    %8 = vector.broadcast %7 : vector<8x1xf32> to vector<8x256xf32>
    %9 = arith.mulf %6, %8 : vector<8x256xf32>
    %10 = arith.addf %4, %9 : vector<8x256xf32>
    %c0_9 = arith.constant 0 : index
    %c0_10 = arith.constant 0 : index
    %c0_11 = arith.constant 0 : index
    %11 = vector.load %arg7[%c0_9, %c0_10, %c0_11] : memref<1x16x256xf32, #tpu.memory_space<vmem>>, vector<1x8x256xf32>
    %12 = vector.shape_cast %11 : vector<1x8x256xf32> to vector<8x256xf32>
    %13 = vector.shape_cast %10 : vector<8x256xf32> to vector<1x8x256xf32>
    tpu.vector_store %arg7[%c0_9, %c0_10, %c0_11], %13 {strides = array<i32>} : memref<1x16x256xf32, #tpu.memory_space<vmem>>, vector<1x8x256xf32>,
    %c0_12 = arith.constant 0 : index
    %c8 = arith.constant 8 : index
    %c0_13 = arith.constant 0 : index
    %14 = vector.load %arg3[%c0_12, %c8, %c0_13] : memref<1x16x256xf32, #tpu.memory_space<vmem>>, vector<1x8x256xf32>
    %15 = vector.shape_cast %14 : vector<1x8x256xf32> to vector<8x256xf32>
    %c0_14 = arith.constant 0 : index
    %c8_15 = arith.constant 8 : index
    %c0_16 = arith.constant 0 : index
    %16 = vector.load %arg7[%c0_14, %c8_15, %c0_16] : memref<1x16x256xf32, #tpu.memory_space<vmem>>, vector<1x8x256xf32>
    %17 = vector.shape_cast %16 : vector<1x8x256xf32> to vector<8x256xf32>
    %18 = vector.shape_cast %15 : vector<8x256xf32> to vector<1x8x256xf32>
    tpu.vector_store %arg7[%c0_14, %c8_15, %c0_16], %18 {strides = array<i32>} : memref<1x16x256xf32, #tpu.memory_space<vmem>>, vector<1x8x256xf32>,
    return
  }
  func.func @transform_0(%arg0: i32, %arg1: i32, %arg2: memref<4xi32, #tpu.memory_space<smem>>) -> (i32, i32, i32) {
    %c0_i32 = arith.constant 0 : i32
    %c0_i32_0 = arith.constant 0 : i32
    return %arg0, %c0_i32, %arg1 : i32, i32, i32
  }
  func.func @transform_1(%arg0: i32, %arg1: i32, %arg2: memref<4xi32, #tpu.memory_space<smem>>) -> (i32, i32, i32) {
    %0 = arith.index_cast %arg0 : i32 to index
    %1 = memref.load %arg2[%0] : memref<4xi32, #tpu.memory_space<smem>>
    %c0_i32 = arith.constant 0 : i32
    %c0_i32_0 = arith.constant 0 : i32
    return %1, %c0_i32, %arg1 : i32, i32, i32
  }
  func.func @transform_2(%arg0: i32, %arg1: i32, %arg2: memref<4xi32, #tpu.memory_space<smem>>) -> (i32, i32) {
    %c0_i32 = arith.constant 0 : i32
    %c0_i32_0 = arith.constant 0 : i32
    %c0_i32_1 = arith.constant 0 : i32
    return %c0_i32, %c0_i32_0 : i32, i32
  }
  func.func @transform_3(%arg0: i32, %arg1: i32, %arg2: memref<4xi32, #tpu.memory_space<smem>>) -> (i32, i32) {
    %c0_i32 = arith.constant 0 : i32
    %c0_i32_0 = arith.constant 0 : i32
    %c0_i32_1 = arith.constant 0 : i32
    return %c0_i32, %c0_i32_0 : i32, i32
  }
  func.func @transform_4(%arg0: i32, %arg1: i32, %arg2: memref<4xi32, #tpu.memory_space<smem>>) -> (i32, i32, i32) {
    %c0_i32 = arith.constant 0 : i32
    %c0_i32_0 = arith.constant 0 : i32
    return %arg0, %c0_i32, %arg1 : i32, i32, i32
  }
}

</mosaic_0001>

<llo_original>
// kernel: tpu_custom_call.1
$region0: #{tpu_custom_call.1}
  #allocation0 [shape = 'u32[]', space=smem, size = 0x4, offset = 0x4, fixed_abs, tag = 'smem constant byte address 0x4 - core index']
  #allocation1 [shape = 'u32[144,128]{1,0:T(1,128)}', space=vmem, size = 0x12000, scoped, tag = 'internal scratch']
  #allocation2 [shape = 's32[1]{0}', space=sflag, size = 0x4, scoped, tag = 'scoped memory for tpu_custom_call.1']
  #allocation3 [shape = 'u8[512]{0}', space=smem, size = 0x200, scoped, tag = 'prefetched SMEM operand 0']
  %s0 = inlined_call_operand.vmem [shape: s32[4], index: 0, kind: input, shape index: {}]
  %s1 = inlined_call_operand.hbm [shape: f32[4,16,256], index: 1, kind: input, shape index: {}]
  %s2 = inlined_call_operand.hbm [shape: f32[4,16,256], index: 2, kind: input, shape index: {}]
  %s3 = inlined_call_operand.vmem [shape: f32[8,1], index: 3, kind: input, shape index: {}]
  %s4 = inlined_call_operand.vmem [shape: f32[8,1], index: 4, kind: input, shape index: {}]
  %s5 = inlined_call_operand.hbm [shape: f32[4,16,256], index: 5, kind: output, shape index: {}]
  %s6 = sld [smem:[#allocation0]]
  $region57: #{tpu_custom_call.1} parent=0
    _
  %s8 = ssub.s32 1, %s6
  %s9 = scalar_select 0, %s8, %s6
  %s10 = sshll.u32 %s0, 4
  %s11 = int_to_ptr.vmem [resolvable:$true] %s10
  %13 = dma.vmem_to_smem %s11, 16, [#allocation3], [#allocation2]
  %14 = dma.done [#allocation2], 16
  %15 = sfence
  $region1: #{tpu_custom_call.1} parent=0
    #allocation4 [shape = 'u8[32768]{0}', space=vmem, size = 0x8000, scoped, tag = 'input window, operand 1']
    #allocation5 [shape = 's32[2]{0}', space=sflag, size = 0x8, scoped, tag = 'scoped memory for tpu_custom_call.1']
    #allocation6 [shape = 's32[2]{0}', space=sflag, size = 0x8, scoped, tag = 'scoped memory for tpu_custom_call.1']
    #allocation7 [shape = 'u8[16384]{0}', space=vmem, size = 0x4000, scoped, tag = 'input window, operand 2']
    #allocation8 [shape = 's32[2]{0}', space=sflag, size = 0x8, scoped, tag = 'scoped memory for tpu_custom_call.1']
    #allocation9 [shape = 'u8[32768]{0}', space=vmem, size = 0x8000, scoped, tag = 'output window, operand 0']
    %16 = vsyncpa [#allocation5], 0
    %s17 = scalar_lea.sflag [#allocation5], 1
    %18 = vsyncpa %s17, 0
    %19 = vsyncpa [#allocation8], 0
    %s20 = scalar_lea.sflag [#allocation8], 1
    %21 = vsyncpa %s20, 0
    %22 = vsyncpa [#allocation6], 0
    %s23 = scalar_lea.sflag [#allocation6], 1
    %24 = vsyncpa %s23, 0
    loop: start=0, step=1, limit=6
    $region2: #{tpu_custom_call.1} parent=1 // loop_pre_header
      _
    $region3: #{tpu_custom_call.1} parent=1 // loop_header
      %s26 = sphi 0, %s30
      %p27 = scmp.ge.s32.totalorder %s26, 6
      %s33 = sphi 0, %s45
      %s34 = sphi 0, %s41
      %s35 = sphi 0, %s33
      %s36 = sphi 0, %s34
      %s37 = sphi 0, %s35
      %s38 = sphi 0, %s36
      %s50 = sphi 0, %s52
      %s53 = sphi 0, %s50
      %s54 = sphi 0, %s53
      %s70 = sphi 0, %s54
      %s80 = sphi 0, %s82
      %s83 = sphi 0, %s80
      %s84 = sphi 0, %s83
      %s100 = sphi 0, %s84
      %s104 = sphi 0, %s104
      %s106 = sphi 0, %s104
      %s107 = sphi 0, %s106
      %s121 = sphi 0, %s107
      %s125 = sphi 0, %s125
      %s127 = sphi 0, %s125
      %s128 = sphi 0, %s127
      %s142 = sphi 0, %s128
      %s150 = sphi 0, %s152
      %s153 = sphi 0, %s150
      %s154 = sphi 0, %s153
      %s170 = sphi 0, %s154
    $region4: #{tpu_custom_call.1} parent=1 // loop_header_branch
      %29 = sbr.rel (%p27) target = $region8
    $region5: #{tpu_custom_call.1} parent=1 // loop_body
      %s31 = ssub.s32 %s26, 1
      %s32 = ssub.s32 %s26, 2
      %s39 = sadd.s32 1, %s34
      %p40 = scmp.ge.s32.totalorder %s39, 1
      %s41 = scalar_select %p40, 0, %s39
      %s42 = sadd.s32 1, %s33
      %s43 = scalar_select %p40, %s42, %s33
      %p44 = scmp.ge.s32.totalorder %s43, 4
      %s45 = scalar_select %p44, 0, %s43
      %s46 = ssub.s32 %s33, %s45
      %s47 = ssub.s32 %s34, %s41
      %s48 = sor.u32 %s46, %s47
      %p49 = scmp.eq.s32.totalorder %s48, 0
      %s51 = sadd.s32 %s50, 1
      %s52 = scalar_select %p49, %s50, %s51
      %p55 = pneg %p49
      %p56 = scmp.eq.s32.totalorder %s26, 3
      %p57 = por %p55, %p56
      %p58 = scmp.ne.s32.totalorder %s50, %s53
      %p59 = scmp.eq.s32.totalorder %s26, 0
      %p60 = por %p58, %p59
      %p61 = scmp.ne.s32.totalorder %s50, %s53
      %p62 = scmp.eq.s32.totalorder %s31, 3
      %p63 = por %p61, %p62
      %p64 = scmp.ne.s32.totalorder %s53, %s54
      %p65 = scmp.eq.s32.totalorder %s31, 0
      %p66 = por %p64, %p65
      %p67 = scmp.ne.s32.totalorder %s53, %s54
      %p68 = scmp.eq.s32.totalorder %s32, 3
      %p69 = por %p67, %p68
      %p71 = scmp.ne.s32.totalorder %s54, %s70
      %p72 = scmp.eq.s32.totalorder %s32, 0
      %p73 = por %p71, %p72
      %s74 = sld [smem:[#allocation3 + %s33]]
      %s75 = sld [smem:[#allocation3 + %s45]]
      %s76 = ssub.s32 %s74, %s75
      %s77 = ssub.s32 %s34, %s41
      %s78 = sor.u32 %s76, %s77
      %p79 = scmp.eq.s32.totalorder %s78, 0
      %s81 = sadd.s32 %s80, 1
      %s82 = scalar_select %p79, %s80, %s81
      %p85 = pneg %p79
      %p86 = scmp.eq.s32.totalorder %s26, 3
      %p87 = por %p85, %p86
      %p88 = scmp.ne.s32.totalorder %s80, %s83
      %p89 = scmp.eq.s32.totalorder %s26, 0
      %p90 = por %p88, %p89
      %p91 = scmp.ne.s32.totalorder %s80, %s83
      %p92 = scmp.eq.s32.totalorder %s31, 3
      %p93 = por %p91, %p92
      %p94 = scmp.ne.s32.totalorder %s83, %s84
      %p95 = scmp.eq.s32.totalorder %s31, 0
      %p96 = por %p94, %p95
      %p97 = scmp.ne.s32.totalorder %s83, %s84
      %p98 = scmp.eq.s32.totalorder %s32, 3
      %p99 = por %p97, %p98
      %p101 = scmp.ne.s32.totalorder %s84, %s100
      %p102 = scmp.eq.s32.totalorder %s32, 0
      %p103 = por %p101, %p102
      %s105 = sadd.s32 %s104, 1
      %p108 = scmp.eq.s32.totalorder %s26, 3
      %p109 = scmp.ne.s32.totalorder %s104, %s106
      %p110 = scmp.eq.s32.totalorder %s26, 0
      %p111 = por %p109, %p110
      %p112 = scmp.ne.s32.totalorder %s104, %s106
      %p113 = scmp.eq.s32.totalorder %s31, 3
      %p114 = por %p112, %p113
      %p115 = scmp.ne.s32.totalorder %s106, %s107
      %p116 = scmp.eq.s32.totalorder %s31, 0
      %p117 = por %p115, %p116
      %p118 = scmp.ne.s32.totalorder %s106, %s107
      %p119 = scmp.eq.s32.totalorder %s32, 3
      %p120 = por %p118, %p119
      %p122 = scmp.ne.s32.totalorder %s107, %s121
      %p123 = scmp.eq.s32.totalorder %s32, 0
      %p124 = por %p122, %p123
      %s126 = sadd.s32 %s125, 1
      %p129 = scmp.eq.s32.totalorder %s26, 3
      %p130 = scmp.ne.s32.totalorder %s125, %s127
      %p131 = scmp.eq.s32.totalorder %s26, 0
      %p132 = por %p130, %p131
      %p133 = scmp.ne.s32.totalorder %s125, %s127
      %p134 = scmp.eq.s32.totalorder %s31, 3
      %p135 = por %p133, %p134
      %p136 = scmp.ne.s32.totalorder %s127, %s128
      %p137 = scmp.eq.s32.totalorder %s31, 0
      %p138 = por %p136, %p137
      %p139 = scmp.ne.s32.totalorder %s127, %s128
      %p140 = scmp.eq.s32.totalorder %s32, 3
      %p141 = por %p139, %p140
      %p143 = scmp.ne.s32.totalorder %s128, %s142
      %p144 = scmp.eq.s32.totalorder %s32, 0
      %p145 = por %p143, %p144
      %s146 = ssub.s32 %s33, %s45
      %s147 = ssub.s32 %s34, %s41
      %s148 = sor.u32 %s146, %s147
      %p149 = scmp.eq.s32.totalorder %s148, 0
      %s151 = sadd.s32 %s150, 1
      %s152 = scalar_select %p149, %s150, %s151
      %p155 = pneg %p149
      %p156 = scmp.eq.s32.totalorder %s26, 3
      %p157 = por %p155, %p156
      %p158 = scmp.ne.s32.totalorder %s150, %s153
      %p159 = scmp.eq.s32.totalorder %s26, 0
      %p160 = por %p158, %p159
      %p161 = scmp.ne.s32.totalorder %s150, %s153
      %p162 = scmp.eq.s32.totalorder %s31, 3
      %p163 = por %p161, %p162
      %p164 = scmp.ne.s32.totalorder %s153, %s154
      %p165 = scmp.eq.s32.totalorder %s31, 0
      %p166 = por %p164, %p165
      %p167 = scmp.ne.s32.totalorder %s153, %s154
      %p168 = scmp.eq.s32.totalorder %s32, 3
      %p169 = por %p167, %p168
      %p171 = scmp.ne.s32.totalorder %s154, %s170
      %p172 = scmp.eq.s32.totalorder %s32, 0
      %p173 = por %p171, %p172
      %p174 = scmp.le.s32.totalorder 1, %s26
      %p175 = scmp.lt.s32.totalorder %s26, 5
      %p176 = pnand %p174, %p175
      %p177 = pneg %p176
      // Predicated region
      $region9: #{tpu_custom_call.1} parent=5 // pred_check
        _
      $region10: #{tpu_custom_call.1} parent=5 // pred_check_branch
        %179 = sbr.rel (%p176) target = $region12
      $region11: #{tpu_custom_call.1} parent=5 // pred_region
        %s180 = ssub.s32 %s26, 1
        // Predicated region
        $region13: #{tpu_custom_call.1} parent=11 // pred_check
          %p181 = pneg %p117
        $region14: #{tpu_custom_call.1} parent=11 // pred_check_branch
          %183 = sbr.rel (%p181) target = $region16
        $region15: #{tpu_custom_call.1} parent=11 // pred_region
          _
        $region16: #{tpu_custom_call.1} parent=11 // pred_fallthru
          _
        // Predicated region
        $region17: #{tpu_custom_call.1} parent=11 // pred_check
          %p184 = pneg %p138
        $region18: #{tpu_custom_call.1} parent=11 // pred_check_branch
          %186 = sbr.rel (%p184) target = $region20
        $region19: #{tpu_custom_call.1} parent=11 // pred_region
          _
        $region20: #{tpu_custom_call.1} parent=11 // pred_fallthru
          _
      $region12: #{tpu_custom_call.1} parent=5 // pred_fallthru
        _
      %p187 = scmp.lt.s32.totalorder %s26, 4
      // Predicated region
      $region21: #{tpu_custom_call.1} parent=5 // pred_check
        %p188 = pneg %p187
      $region22: #{tpu_custom_call.1} parent=5 // pred_check_branch
        %190 = sbr.rel (%p188) target = $region24
      $region23: #{tpu_custom_call.1} parent=5 // pred_region
        // Predicated region
        $region25: #{tpu_custom_call.1} parent=23 // pred_check
          %p191 = pneg %p60
        $region26: #{tpu_custom_call.1} parent=23 // pred_check_branch
          %193 = sbr.rel (%p191) target = $region28
        $region27: #{tpu_custom_call.1} parent=23 // pred_region
          %s194 = sand.u32 %s50, 1
          %s195 = scalar_lea.sflag [#allocation5], %s194
          %s196 = sand.u32 %s50, 1
          %s197 = smul.addr %s196, 32
          %s198 = scalar_lea.vmem [#allocation4], %s197
          %s199 = smul.u32 2, %s34
          %s201 = ssub.s32 512, 512
          %202 = vsyncadd %s195, %s201
          %s203 = smul.addr %s33, 4
          %s204 = sadd.s32 %s199, %s203
          %s205 = smul.addr %s204, 128
          %s206 = scalar_lea.hbm %s1, %s205
          %s207 = sshll.u32 %s198, 4
          %s208 = int_to_ptr.vmem [resolvable:$true] %s207
          %213 = dma.hbm_to_vmem [thread:$0]  %s206, 512, %s208, %s195, 256, 256, 16
        $region28: #{tpu_custom_call.1} parent=23 // pred_fallthru
          _
        // Predicated region
        $region29: #{tpu_custom_call.1} parent=23 // pred_check
          %p214 = pneg %p90
        $region30: #{tpu_custom_call.1} parent=23 // pred_check_branch
          %216 = sbr.rel (%p214) target = $region32
        $region31: #{tpu_custom_call.1} parent=23 // pred_region
          %s217 = sand.u32 %s80, 1
          %s218 = scalar_lea.sflag [#allocation8], %s217
          %s219 = sand.u32 %s80, 1
          %s220 = smul.addr %s219, 16
          %s221 = scalar_lea.vmem [#allocation7], %s220
          %s222 = sld [smem:[#allocation3 + %s33]]
          %s223 = smul.u32 2, %s34
          %s225 = ssub.s32 256, 256
          %226 = vsyncadd %s218, %s225
          %s227 = smul.addr %s222, 4
          %s228 = sadd.s32 %s223, %s227
          %s229 = smul.addr %s228, 128
          %s230 = scalar_lea.hbm %s2, %s229
          %s232 = sshll.u32 %s221, 4
          %s233 = int_to_ptr.vmem [resolvable:$true] %s232
          %235 = dma.hbm_to_vmem [thread:$0]  %s230, 256, %s233, %s218
        $region32: #{tpu_custom_call.1} parent=23 // pred_fallthru
          _
      $region24: #{tpu_custom_call.1} parent=5 // pred_fallthru
        _
      %p236 = scmp.le.s32.totalorder 1, %s26
      %p237 = scmp.lt.s32.totalorder %s26, 5
      %p238 = pnand %p236, %p237
      %p239 = pneg %p238
      // Predicated region
      $region33: #{tpu_custom_call.1} parent=5 // pred_check
        _
      $region34: #{tpu_custom_call.1} parent=5 // pred_check_branch
        %241 = sbr.rel (%p238) target = $region36
      $region35: #{tpu_custom_call.1} parent=5 // pred_region
        %s242 = ssub.s32 %s26, 1
        %s243 = sand.u32 %s53, 1
        %s244 = scalar_lea.sflag [#allocation5], %s243
        %s245 = sand.u32 %s53, 1
        %s246 = smul.addr %s245, 32
        %s247 = scalar_lea.vmem [#allocation4], %s246
        // Predicated region
        $region37: #{tpu_custom_call.1} parent=35 // pred_check
          %p248 = pneg %p66
        $region38: #{tpu_custom_call.1} parent=35 // pred_check_branch
          %250 = sbr.rel (%p248) target = $region40
        $region39: #{tpu_custom_call.1} parent=35 // pred_region
          %251 = dma.done %s244, 512
        $region40: #{tpu_custom_call.1} parent=35 // pred_fallthru
          _
        %s252 = sand.u32 %s83, 1
        %s253 = scalar_lea.sflag [#allocation8], %s252
        %s254 = sand.u32 %s83, 1
        %s255 = smul.addr %s254, 16
        %s256 = scalar_lea.vmem [#allocation7], %s255
        // Predicated region
        $region41: #{tpu_custom_call.1} parent=35 // pred_check
          %p257 = pneg %p96
        $region42: #{tpu_custom_call.1} parent=35 // pred_check_branch
          %259 = sbr.rel (%p257) target = $region44
        $region43: #{tpu_custom_call.1} parent=35 // pred_region
          %260 = dma.done %s253, 256
        $region44: #{tpu_custom_call.1} parent=35 // pred_fallthru
          _
        %s261 = sand.u32 %s53, 1
        %s262 = scalar_lea.sflag [#allocation5], %s261
        %s263 = sand.u32 %s53, 1
        %s264 = smul.addr %s263, 32
        %s265 = scalar_lea.vmem [#allocation4], %s264
        %p266 = pneg %p66
        %p267 = pneg %p63
        %s268 = sand.u32 %s83, 1
        %s269 = scalar_lea.sflag [#allocation8], %s268
        %s270 = sand.u32 %s83, 1
        %s271 = smul.addr %s270, 16
        %s272 = scalar_lea.vmem [#allocation7], %s271
        %p273 = pneg %p96
        %p274 = pneg %p93
        %p275 = pneg %p117
        %p276 = pneg %p114
        %p277 = pneg %p138
        %p278 = pneg %p135
        %p279 = pneg %p166
        %p280 = pneg %p163
        %s281 = sand.u32 %s153, 1
        %s282 = scalar_lea.sflag [#allocation6], %s281
        %s283 = sand.u32 %s153, 1
        %s284 = smul.addr %s283, 32
        %s285 = scalar_lea.vmem [#allocation9], %s284
        %s286 = smul.u32 2, %s36
        %s287 = sld [smem:[#allocation3 + %s35]]
        %s288 = smul.u32 2, %s36
        %s289 = smul.u32 2, %s36
        %v290 = vld [vmem:[%s247] sm:$0xff]
        %v291 = vld [vmem:[%s247 + $0x8] sm:$0xff]
        %v292 = vld [vmem:[%s3] sm:$0xff]
        %294 = vset.pattern.permute.xlu0 0
        %295 = vperm.xlu0 %294, %v292
        %v296 = vpop.permute.xlu0 %295
        %v298 = vmul.f32 %v290, %v296
        %v299 = vmul.f32 %v291, %v296
        %v300 = vld [vmem:[%s256] sm:$0xff]
        %v301 = vld [vmem:[%s256 + $0x8] sm:$0xff]
        %v302 = vld [vmem:[%s4] sm:$0xff]
        %304 = vset.pattern.permute.xlu0 0
        %305 = vperm.xlu0 %304, %v302
        %v306 = vpop.permute.xlu0 %305
        %v308 = vmul.f32 %v300, %v306
        %v309 = vmul.f32 %v301, %v306
        %v310 = vadd.f32 %v298, %v308
        %v311 = vadd.f32 %v299, %v309
        %312 = vst [vmem:[%s285] sm:$0xff] %v310
        %313 = vst [vmem:[%s285 + $0x8] sm:$0xff] %v311
        %v314 = vld [vmem:[%s247 + $0x10] sm:$0xff]
        %v315 = vld [vmem:[%s247 + $0x18] sm:$0xff]
        %316 = vst [vmem:[%s285 + $0x10] sm:$0xff] %v314
        %317 = vst [vmem:[%s285 + $0x18] sm:$0xff] %v315
        %s318 = sand.u32 %s153, 1
        %s319 = scalar_lea.sflag [#allocation6], %s318
        %s320 = sand.u32 %s153, 1
        %s321 = smul.addr %s320, 32
        %s322 = scalar_lea.vmem [#allocation9], %s321
        // Predicated region
        $region45: #{tpu_custom_call.1} parent=35 // pred_check
          %p323 = pneg %p163
        $region46: #{tpu_custom_call.1} parent=35 // pred_check_branch
          %325 = sbr.rel (%p323) target = $region48
        $region47: #{tpu_custom_call.1} parent=35 // pred_region
          %s326 = smul.u32 2, %s36
          %s328 = ssub.s32 512, 512
          %329 = vsyncadd %s319, %s328
          %s330 = smul.addr %s35, 4
          %s331 = sadd.s32 %s326, %s330
          %s332 = smul.addr %s331, 128
          %s333 = scalar_lea.hbm %s5, %s332
          %s334 = sshll.u32 %s322, 4
          %s335 = int_to_ptr.vmem [resolvable:$true] %s334
          %340 = dma.vmem_to_hbm [thread:$0]  %s335, 512, %s333, %s319, 256, 256, 16
        $region48: #{tpu_custom_call.1} parent=35 // pred_fallthru
          _
      $region36: #{tpu_custom_call.1} parent=5 // pred_fallthru
        _
      %p341 = scmp.le.s32.totalorder 2, %s26
      // Predicated region
      $region49: #{tpu_custom_call.1} parent=5 // pred_check
        %p342 = pneg %p341
      $region50: #{tpu_custom_call.1} parent=5 // pred_check_branch
        %344 = sbr.rel (%p342) target = $region52
      $region51: #{tpu_custom_call.1} parent=5 // pred_region
        %s345 = ssub.s32 %s26, 2
        // Predicated region
        $region53: #{tpu_custom_call.1} parent=51 // pred_check
          %p346 = pneg %p169
        $region54: #{tpu_custom_call.1} parent=51 // pred_check_branch
          %348 = sbr.rel (%p346) target = $region56
        $region55: #{tpu_custom_call.1} parent=51 // pred_region
          %s349 = sand.u32 %s154, 1
          %s350 = scalar_lea.sflag [#allocation6], %s349
          %s351 = sand.u32 %s154, 1
          %s352 = smul.addr %s351, 32
          %s353 = scalar_lea.vmem [#allocation9], %s352
          %354 = dma.done %s350, 512
        $region56: #{tpu_custom_call.1} parent=51 // pred_fallthru
          _
      $region52: #{tpu_custom_call.1} parent=5 // pred_fallthru
        _
    $region6: #{tpu_custom_call.1} parent=1 // loop_footer
      %s30 = sadd.s32 1, %s26
    $region7: #{tpu_custom_call.1} parent=1 // loop_footer_branch
      %25 = sbr.rel target = $region3
    $region8: #{tpu_custom_call.1} parent=1 // loop_exit
      _
    %355 = vsyncpa [#allocation5], 1
    %s356 = scalar_lea.sflag [#allocation5], 1
    %357 = vsyncpa %s356, 1
    %358 = vsyncpa [#allocation8], 1
    %s359 = scalar_lea.sflag [#allocation8], 1
    %360 = vsyncpa %s359, 1
    %361 = vsyncpa [#allocation6], 1
    %s362 = scalar_lea.sflag [#allocation6], 1
    %363 = vsyncpa %s362, 1

</llo_original>
